<compile_context>
chip_gen: v6e
topology: v6e:2x2x1
jax: 0.10.0
libtpu: 0.0.40
codegen_flags: <defaults>
</compile_context>

<pallas_src>
import math

import jax
import jax.numpy as jnp
from jax.experimental import pallas as pl
from jax.experimental.pallas import tpu as pltpu


def _build_pe(d_model: int, max_len: int = 5000) -> jnp.ndarray:
    """Deterministic buffer construction, identical to the PyTorch __init__."""
    position = jnp.arange(0, max_len, dtype=jnp.float32)[:, None]          # (L, 1)
    div_term = jnp.exp(
        jnp.arange(0, d_model, 2, dtype=jnp.float32) * (-math.log(10000.0) / d_model)
    )                                                                       # (D/2,)
    pe = jnp.zeros((max_len, d_model), dtype=jnp.float32)
    pe = pe.at[:, 0::2].set(jnp.sin(position * div_term))
    pe = pe.at[:, 1::2].set(jnp.cos(position * div_term))
    social_encoding = jnp.sin(position / 100.0) * 0.1                       # (L, 1)
    pe = pe + social_encoding                                               # broadcast over D
    return pe[:, None, :]                                                   # (L, 1, D)


def _pe_add_kernel(x_ref, pe_ref, o_ref):
    # Works for both the 2D lane-dense layout (blocks (ts, B*D)) and the 3D
    # layout (x block (ts, B, D), pe block (ts, 1, D) broadcast over batch).
    o_ref[...] = (x_ref[...] + pe_ref[...]).astype(o_ref.dtype)


def _vmem_budget_bytes() -> int:
    """Per-generation pipelined-VMEM budget (with headroom) and vmem limit."""
    try:
        cap = int(pltpu.get_tpu_info().vmem_capacity_bytes)
    except Exception:
        cap = 64 * 1024 * 1024  # assume v7x (smallest VMEM) if query fails
    # ~70% of physical: ~45 MiB on v7x (64 MiB), ~90 MiB on v5e/v6e (128 MiB)
    return min(int(cap * 0.7), 96 * 1024 * 1024)


def _pick_seq_tile(S: int, per_row_pipelined_bytes: int, per_row_x_bytes: int,
                   budget_bytes: int, target_block_bytes: int = 4 * 1024 * 1024) -> int:
    """Largest sequence tile whose double-buffered footprint fits the budget,
    targeting ~4 MiB per x block, keeping >= 2 grid steps when S allows."""
    max_by_budget = max(1, budget_bytes // max(per_row_pipelined_bytes, 1))
    max_by_target = max(1, target_block_bytes // max(per_row_x_bytes, 1))
    ts = min(S, max_by_budget, max_by_target)
    if S >= 16:
        # keep at least 2 'parallel' grid steps so both v7x TensorCores work
        ts = min(ts, pl.cdiv(S, 2))
    if ts < S:
        # block's second-minor dim (2D path) must be a multiple of 8
        ts = max(8, (ts // 8) * 8)
        ts = min(ts, S)
    return ts


def positional_encoding_forward(x: jnp.ndarray, pe: jnp.ndarray) -> jnp.ndarray:
    """x: (S, B, D); pe: (max_len, 1, D) float32. Returns x + pe[:S]."""
    S, B, D = x.shape
    max_len = pe.shape[0]
    if S > max_len:
        raise ValueError(f"sequence length {S} exceeds max_len {max_len}")

    budget = _vmem_budget_bytes()
    x_item = jnp.dtype(x.dtype).itemsize
    pe_item = jnp.dtype(pe.dtype).itemsize
    lane_dense = (D < 128) or (B < 8)

    if lane_dense:
        # Lane-dense path: fuse (B, D) into one lane axis so every store is a
        # full-width vst (no masked partial stores, no sublane broadcast).
        BD = B * D
        x2 = x.reshape(S, BD)
        # tile the tiny (S, D) pe across batch -> (S, B*D); extra HBM traffic
        # is S*(B-1)*D*4 bytes, negligible vs. the x read/write streams.
        pe2 = jnp.tile(pe[:S, 0, :], (1, B))

        row_x = BD * x_item
        row_pe = BD * pe_item
        per_row_pipe = 2 * (2 * row_x + row_pe)   # double-buffered in+out+pe
        ts = _pick_seq_tile(S, per_row_pipe, row_x, budget)
        grid = (pl.cdiv(S, ts),)

        cost = pl.CostEstimate(flops=S * BD, transcendentals=0,
                               bytes_accessed=2 * S * row_x + S * row_pe)

        out2 = pl.pallas_call(
            _pe_add_kernel,
            out_shape=jax.ShapeDtypeStruct((S, BD), x.dtype),
            grid_spec=pltpu.PrefetchScalarGridSpec(
                num_scalar_prefetch=0,
                grid=grid,
                in_specs=[
                    pl.BlockSpec((ts, BD), lambda i: (i, 0)),
                    pl.BlockSpec((ts, BD), lambda i: (i, 0)),
                ],
                out_specs=pl.BlockSpec((ts, BD), lambda i: (i, 0)),
            ),
            compiler_params=pltpu.CompilerParams(
                dimension_semantics=("parallel",),
                vmem_limit_bytes=budget,
            ),
            cost_estimate=cost,
        )(x2, pe2)
        return out2.reshape(S, B, D)

    # 3D path (B, D already map well onto sublane/lane): pass the FULL pe
    # buffer; the index_map only ever fetches the first cdiv(S, ts) blocks,
    # so no host-side slice copy is materialized.
    row_x = B * D * x_item
    row_pe = D * pe_item
    per_row_pipe = 2 * (2 * row_x + row_pe)
    ts = _pick_seq_tile(S, per_row_pipe, row_x, budget)
    grid = (pl.cdiv(S, ts),)

    cost = pl.CostEstimate(flops=S * B * D, transcendentals=0,
                           bytes_accessed=2 * S * row_x + S * row_pe)

    return pl.pallas_call(
        _pe_add_kernel,
        out_shape=jax.ShapeDtypeStruct((S, B, D), x.dtype),
        grid_spec=pltpu.PrefetchScalarGridSpec(
            num_scalar_prefetch=0,
            grid=grid,
            in_specs=[
                pl.BlockSpec((ts, B, D), lambda i: (i, 0, 0)),
                pl.BlockSpec((ts, 1, D), lambda i: (i, 0, 0)),
            ],
            out_specs=pl.BlockSpec((ts, B, D), lambda i: (i, 0, 0)),
        ),
        compiler_params=pltpu.CompilerParams(
            dimension_semantics=("parallel",),
            vmem_limit_bytes=budget,
        ),
        cost_estimate=cost,
    )(x, pe)


if __name__ == "__main__":
    # Small shapes consistent with the module: seq=8, batch=2, d_model=32.
    S, B, D = 8, 2, 32
    max_len = 64  # smaller than 5000 to keep the buffer tiny; semantics identical

    key = jax.random.PRNGKey(0)
    x = jax.random.normal(key, (S, B, D), dtype=jnp.float32)

    pe = _build_pe(D, max_len)

    out = positional_encoding_forward(x, pe)
    jax.block_until_ready(out)

    # Reference check in plain JAX (same math as the PyTorch forward).
    ref = x + pe[:S]
    assert out.shape == (S, B, D)
    assert jnp.allclose(out, ref, atol=1e-6), "mismatch vs reference"

    print("KERNEL_OK")
</pallas_src>

<mosaic_0001>
module attributes {stable_mosaic.version = 11 : i64} {
  func.func @_pe_add_kernel(%arg0: i32, %arg1: memref<8x64xf32, #tpu.memory_space<vmem>>, %arg2: memref<8x64xf32, #tpu.memory_space<vmem>>, %arg3: memref<8x64xf32, #tpu.memory_space<vmem>>) attributes {dimension_semantics = [#tpu.dimension_semantics<parallel>], iteration_bounds = array<i64: 1>, scalar_prefetch = 0 : i64, scratch_operands = 0 : i64, tpu.core_type = #tpu.core_type<tc>, window_params = [{transform_indices = @transform_0, window_bounds = array<i64: 8, 64>}, {transform_indices = @transform_1, window_bounds = array<i64: 8, 64>}, {transform_indices = @transform_2, window_bounds = array<i64: 8, 64>}]} {
    %c0 = arith.constant 0 : index
    %c0_0 = arith.constant 0 : index
    %0 = vector.load %arg1[%c0, %c0_0] : memref<8x64xf32, #tpu.memory_space<vmem>>, vector<8x64xf32>
    %c0_1 = arith.constant 0 : index
    %c0_2 = arith.constant 0 : index
    %1 = vector.load %arg2[%c0_1, %c0_2] : memref<8x64xf32, #tpu.memory_space<vmem>>, vector<8x64xf32>
    %2 = arith.addf %0, %1 : vector<8x64xf32>
    %c0_3 = arith.constant 0 : index
    %c0_4 = arith.constant 0 : index
    %3 = vector.load %arg3[%c0_3, %c0_4] : memref<8x64xf32, #tpu.memory_space<vmem>>, vector<8x64xf32>
    tpu.vector_store %arg3[%c0_3, %c0_4], %2 {strides = array<i32>} : memref<8x64xf32, #tpu.memory_space<vmem>>, vector<8x64xf32>,
    return
  }
  func.func @transform_0(%arg0: i32) -> (i32, i32) {
    %c0_i32 = arith.constant 0 : i32
    %c0_i32_0 = arith.constant 0 : i32
    return %arg0, %c0_i32 : i32, i32
  }
  func.func @transform_1(%arg0: i32) -> (i32, i32) {
    %c0_i32 = arith.constant 0 : i32
    %c0_i32_0 = arith.constant 0 : i32
    return %arg0, %c0_i32 : i32, i32
  }
  func.func @transform_2(%arg0: i32) -> (i32, i32) {
    %c0_i32 = arith.constant 0 : i32
    %c0_i32_0 = arith.constant 0 : i32
    return %arg0, %c0_i32 : i32, i32
  }
}

</mosaic_0001>

<llo_original>
// kernel: tpu_custom_call.1
$region0: #{tpu_custom_call.1}
  #allocation0 [shape = 'u32[]', space=smem, size = 0x4, offset = 0x4, fixed_abs, tag = 'smem constant byte address 0x4 - core index']
  #allocation1 [shape = 'u32[144,128]{1,0:T(1,128)}', space=vmem, size = 0x12000, scoped, tag = 'internal scratch']
  %s0 = inlined_call_operand.hbm [shape: f32[8,64], index: 0, kind: input, shape index: {}]
  %s1 = inlined_call_operand.hbm [shape: f32[8,64], index: 1, kind: input, shape index: {}]
  %s2 = inlined_call_operand.hbm [shape: f32[8,64], index: 2, kind: output, shape index: {}]
  %s3 = sld [smem:[#allocation0]]
  $region26: #{tpu_custom_call.1} parent=0
    _
  %s5 = ssub.s32 1, %s3
  %s6 = scalar_select 0, %s5, %s3
  $region1: #{tpu_custom_call.1} parent=0
    #allocation2 [shape = 'u8[4096]{0}', space=vmem, size = 0x1000, scoped, tag = 'input window, operand 0, single buffered']
    #allocation3 [shape = 's32[1]{0}', space=sflag, size = 0x4, scoped, tag = 'scoped memory for tpu_custom_call.1']
    #allocation4 [shape = 's32[1]{0}', space=sflag, size = 0x4, scoped, tag = 'scoped memory for tpu_custom_call.1']
    #allocation5 [shape = 'u8[4096]{0}', space=vmem, size = 0x1000, scoped, tag = 'input window, operand 1, single buffered']
    #allocation6 [shape = 's32[1]{0}', space=sflag, size = 0x4, scoped, tag = 'scoped memory for tpu_custom_call.1']
    #allocation7 [shape = 'u8[4096]{0}', space=vmem, size = 0x1000, scoped, tag = 'output window, operand 0, single buffered']
    %7 = vsyncpa [#allocation3], 0
    %8 = vsyncpa [#allocation6], 0
    %9 = vsyncpa [#allocation4], 0
    // Predicated region
    $region2: #{tpu_custom_call.1} parent=1 // pred_check
      _
    $region3: #{tpu_custom_call.1} parent=1 // pred_check_branch
      %11 = sbr.rel (0) target = $region5
    $region4: #{tpu_custom_call.1} parent=1 // pred_region
      %s13 = ssub.s32 128, 128
      %14 = vsyncadd [#allocation3], %s13
      %s16 = sshll.u32 [#allocation2], 4
      %s17 = int_to_ptr.vmem [resolvable:$true] %s16
      %19 = dma.hbm_to_vmem [thread:$0]  %s0, 128, %s17, [#allocation3]
    $region5: #{tpu_custom_call.1} parent=1 // pred_fallthru
      _
    // Predicated region
    $region6: #{tpu_custom_call.1} parent=1 // pred_check
      _
    $region7: #{tpu_custom_call.1} parent=1 // pred_check_branch
      %21 = sbr.rel (0) target = $region9
    $region8: #{tpu_custom_call.1} parent=1 // pred_region
      %s23 = ssub.s32 128, 128
      %24 = vsyncadd [#allocation6], %s23
      %s26 = sshll.u32 [#allocation5], 4
      %s27 = int_to_ptr.vmem [resolvable:$true] %s26
      %29 = dma.hbm_to_vmem [thread:$0]  %s1, 128, %s27, [#allocation6]
    $region9: #{tpu_custom_call.1} parent=1 // pred_fallthru
      _
    // Predicated region
    $region10: #{tpu_custom_call.1} parent=1 // pred_check
      _
    $region11: #{tpu_custom_call.1} parent=1 // pred_check_branch
      %31 = sbr.rel (0) target = $region13
    $region12: #{tpu_custom_call.1} parent=1 // pred_region
      %32 = dma.done [#allocation3], 128
    $region13: #{tpu_custom_call.1} parent=1 // pred_fallthru
      _
    // Predicated region
    $region14: #{tpu_custom_call.1} parent=1 // pred_check
      _
    $region15: #{tpu_custom_call.1} parent=1 // pred_check_branch
      %34 = sbr.rel (0) target = $region17
    $region16: #{tpu_custom_call.1} parent=1 // pred_region
      %35 = dma.done [#allocation6], 128
    $region17: #{tpu_custom_call.1} parent=1 // pred_fallthru
      _
    %v36 = vld [vmem:[#allocation2] sm:$0xff]
    %v37 = vld [vmem:[#allocation5] sm:$0xff]
    %v38 = vadd.f32 %v36, %v37
    %vm39 = vcmask 523264
    %40 = vst.msk [vmem:[#allocation7] sm:$0xff] %vm39, %v38
    // Predicated region
    $region18: #{tpu_custom_call.1} parent=1 // pred_check
      _
    $region19: #{tpu_custom_call.1} parent=1 // pred_check_branch
      %42 = sbr.rel (0) target = $region21
    $region20: #{tpu_custom_call.1} parent=1 // pred_region
      %s44 = ssub.s32 128, 128
      %45 = vsyncadd [#allocation4], %s44
      %s47 = sshll.u32 [#allocation7], 4
      %s48 = int_to_ptr.vmem [resolvable:$true] %s47
      %50 = dma.vmem_to_hbm [thread:$0]  %s48, 128, %s2, [#allocation4]
    $region21: #{tpu_custom_call.1} parent=1 // pred_fallthru
      _
    // Predicated region
    $region22: #{tpu_custom_call.1} parent=1 // pred_check
      _
    $region23: #{tpu_custom_call.1} parent=1 // pred_check_branch
      %52 = sbr.rel (0) target = $region25
    $region24: #{tpu_custom_call.1} parent=1 // pred_region
      %53 = dma.done [#allocation4], 128
    $region25: #{tpu_custom_call.1} parent=1 // pred_fallthru
      _
    %54 = vsyncpa [#allocation3], 1
    %55 = vsyncpa [#allocation6], 1
    %56 = vsyncpa [#allocation4], 1

</llo_original>
